<compile_context>
chip_gen: v7x
topology: tpu7x:2x2x1
jax: 0.10.0
libtpu: 0.0.40
codegen_flags: <defaults>
</compile_context>

<pallas_src>
import functools

import jax
import jax.numpy as jnp
from jax.experimental import pallas as pl
from jax.experimental.pallas import tpu as pltpu


def _cdiv(a, b):
    return -(-a // b)


def _layernorm2d_kernel(x_ref, gamma_ref, beta_ref, o_ref, *, eps, inv_c):
    # x_ref: (TB, C, T) block; normalize over the channel (sublane) axis=1.
    xf = x_ref[...].astype(jnp.float32)                 # (TB, C, T)
    s1 = jnp.sum(xf, axis=1, keepdims=True)             # (TB, 1, T)
    s2 = jnp.sum(xf * xf, axis=1, keepdims=True)        # (TB, 1, T)
    mean = s1 * inv_c
    var = s2 * inv_c - mean * mean                      # biased, like torch LayerNorm
    inv = jax.lax.rsqrt(var + eps)                      # EUP rsqrt
    gamma = gamma_ref[...]                              # (1, C, 1) f32, lane-broadcast
    beta = beta_ref[...]                                # (1, C, 1) f32
    o_ref[...] = (((xf - mean) * inv) * gamma + beta).astype(o_ref.dtype)


def _vmem_budgets():
    """Derive (vmem_limit_bytes, per-step block byte budget) from the chip."""
    cap = 64 * 1024 * 1024  # conservative fallback: v7x per-TC physical VMEM
    try:
        info = pltpu.get_tpu_info()
        cap = int(getattr(info, "vmem_capacity_bytes", cap))
    except Exception:
        pass
    vmem_limit = min(cap // 2, 64 * 1024 * 1024)        # 32 MiB on v7x, 64 MiB on v5e/v6e
    block_budget = max(vmem_limit // 2, 2 * 1024 * 1024)  # headroom for internal scratch
    return vmem_limit, block_budget


def _bytes_per_column(c, itemsize):
    # Per lane-column footprint: in + out native-dtype blocks, each
    # double-buffered (2x each), plus ~2 full-tile f32 in-kernel temps
    # (widened x and x*x) that Mosaic materializes.
    return c * (4 * itemsize + 2 * 4)


def _pick_tile_hw(c, hw, itemsize, block_budget, batch):
    """Lane-tile size: VMEM-safe, <=2048 lanes, and enough grid steps."""
    max_lanes = block_budget // max(_bytes_per_column(c, itemsize), 1)
    max_lanes = max(128, min(max_lanes, 2048))
    if hw <= max_lanes:
        tile = hw
    else:
        tile = max(128, (max_lanes // 128) * 128)        # multiple of 128 -> lane-dense
    # Keep the pipeline warm / both v7x cores busy: aim for >= 8 grid steps.
    min_steps = 8
    if batch * _cdiv(hw, tile) < min_steps and hw > 128:
        need = _cdiv(min_steps, max(batch, 1))           # spatial tiles per batch element
        cap = max(128, _cdiv(_cdiv(hw, need), 128) * 128)
        tile = min(tile, cap)
    return tile


def _pick_tile_b(b, c, hw, itemsize, block_budget):
    """Batch-tile size for the small-HW regime: >= ~1 MiB per step, VMEM-safe."""
    bytes_per_b = max(c * hw * (4 * itemsize + 8), 1)
    tb_vmem = max(1, block_budget // bytes_per_b)
    tb_target = max(1, (1 << 20) // max(c * hw * itemsize, 1))
    tb = max(1, min(tb_vmem, tb_target, b))
    # Keep at least 2 grid steps (overlap + megacore) when the batch allows it.
    if b >= 2 and _cdiv(b, tb) < 2:
        tb = max(1, b // 2)
    return tb


def layernorm2d(x_nchw, gamma, beta, eps=1e-6, tile_hw=None):
    """LayerNorm over the channel dim of an NCHW tensor (PyTorch LayerNorm2d)."""
    B, C, H, W = x_nchw.shape
    HW = H * W
    x3 = x_nchw.reshape(B, C, HW)                        # free view, no transpose
    itemsize = jnp.dtype(x_nchw.dtype).itemsize
    vmem_limit, block_budget = _vmem_budgets()

    gamma3 = gamma.astype(jnp.float32).reshape(1, C, 1)
    beta3 = beta.astype(jnp.float32).reshape(1, C, 1)
    kernel = functools.partial(_layernorm2d_kernel, eps=float(eps), inv_c=1.0 / C)

    if tile_hw is None and HW < 512:
        # Small-HW regime: tile over batch instead of spatial so each grid step
        # moves a sizeable block and per-step overhead is amortized.
        TB = _pick_tile_b(B, C, HW, itemsize, block_budget)
        grid = (_cdiv(B, TB),)
        in_specs = [
            pl.BlockSpec((TB, C, HW), lambda i: (i, 0, 0)),
            pl.BlockSpec((1, C, 1), lambda i: (0, 0, 0)),
            pl.BlockSpec((1, C, 1), lambda i: (0, 0, 0)),
        ]
        out_specs = pl.BlockSpec((TB, C, HW), lambda i: (i, 0, 0))
        dims = ("parallel",)
    else:
        if tile_hw is None:
            tile_hw = _pick_tile_hw(C, HW, itemsize, block_budget, B)
        grid = (B, _cdiv(HW, tile_hw))
        in_specs = [
            pl.BlockSpec((1, C, tile_hw), lambda b, j: (b, 0, j)),
            pl.BlockSpec((1, C, 1), lambda b, j: (0, 0, 0)),
            pl.BlockSpec((1, C, 1), lambda b, j: (0, 0, 0)),
        ]
        out_specs = pl.BlockSpec((1, C, tile_hw), lambda b, j: (b, 0, j))
        dims = ("parallel", "parallel")

    out = pl.pallas_call(
        kernel,
        out_shape=jax.ShapeDtypeStruct((B, C, HW), x_nchw.dtype),
        grid_spec=pltpu.PrefetchScalarGridSpec(
            num_scalar_prefetch=0,
            grid=grid,
            in_specs=in_specs,
            out_specs=out_specs,
        ),
        compiler_params=pltpu.CompilerParams(
            dimension_semantics=dims,
            vmem_limit_bytes=vmem_limit,
        ),
    )(x3, gamma3, beta3)

    return out.reshape(B, C, H, W)


def layernorm2d_ref(x_nchw, gamma, beta, eps=1e-6):
    x = jnp.transpose(x_nchw, (0, 2, 3, 1)).astype(jnp.float32)
    mean = jnp.mean(x, axis=-1, keepdims=True)
    var = jnp.mean((x - mean) ** 2, axis=-1, keepdims=True)
    y = (x - mean) * jax.lax.rsqrt(var + eps) * gamma + beta
    return jnp.transpose(y, (0, 3, 1, 2)).astype(x_nchw.dtype)


if __name__ == "__main__":
    key = jax.random.PRNGKey(0)

    # Case 1: small spatial extent (batch-tiled path). nn.LayerNorm default
    # init (weight=1, bias=0); module default eps=1e-6.
    B, C, H, W = 2, 4, 16, 16
    k1, k2 = jax.random.split(key)
    x = jax.random.normal(k1, (B, C, H, W), dtype=jnp.float32)
    gamma = jnp.ones((C,), dtype=jnp.float32)
    beta = jnp.zeros((C,), dtype=jnp.float32)

    ln2d = jax.jit(lambda xx, g, b: layernorm2d(xx, g, b, eps=1e-6))
    out = jax.block_until_ready(ln2d(x, gamma, beta))
    ref = layernorm2d_ref(x, gamma, beta, eps=1e-6)
    assert out.shape == (B, C, H, W)
    assert jnp.allclose(out, ref, atol=1e-4, rtol=1e-5), "mismatch vs reference (small-HW path)"

    # Case 2: larger spatial extent (HW-tiled path with min grid-step enforcement).
    B2, C2, H2, W2 = 2, 8, 32, 32
    x2 = jax.random.normal(k2, (B2, C2, H2, W2), dtype=jnp.float32)
    gamma2 = jnp.ones((C2,), dtype=jnp.float32)
    beta2 = jnp.zeros((C2,), dtype=jnp.float32)
    out2 = jax.block_until_ready(ln2d(x2, gamma2, beta2))
    ref2 = layernorm2d_ref(x2, gamma2, beta2, eps=1e-6)
    assert jnp.allclose(out2, ref2, atol=1e-4, rtol=1e-5), "mismatch vs reference (HW-tiled path)"

    print("KERNEL_OK")
</pallas_src>

<mosaic_0001>
module attributes {stable_mosaic.version = 11 : i64} {
  func.func @_layernorm2d_kernel(%arg0: i32, %arg1: memref<1x4x256xf32, #tpu.memory_space<vmem>>, %arg2: memref<1x4x1xf32, #tpu.memory_space<vmem>>, %arg3: memref<1x4x1xf32, #tpu.memory_space<vmem>>, %arg4: memref<1x4x256xf32, #tpu.memory_space<vmem>>) attributes {dimension_semantics = [#tpu.dimension_semantics<parallel>], iteration_bounds = array<i64: 2>, scalar_prefetch = 0 : i64, scratch_operands = 0 : i64, tpu.core_type = #tpu.core_type<tc>, window_params = [{transform_indices = @transform_0, window_bounds = array<i64: 1, 4, 256>}, {pipeline_mode = #tpu.pipeline_mode<synchronous>, transform_indices = @transform_1, window_bounds = array<i64: 1, 4, 1>}, {pipeline_mode = #tpu.pipeline_mode<synchronous>, transform_indices = @transform_2, window_bounds = array<i64: 1, 4, 1>}, {transform_indices = @transform_3, window_bounds = array<i64: 1, 4, 256>}]} {
    %c0 = arith.constant 0 : index
    %c0_0 = arith.constant 0 : index
    %c0_1 = arith.constant 0 : index
    %0 = vector.load %arg1[%c0, %c0_0, %c0_1] : memref<1x4x256xf32, #tpu.memory_space<vmem>>, vector<1x4x256xf32>
    %cst = arith.constant dense<0.000000e+00> : vector<1x256xf32>
    %1 = vector.multi_reduction <add>, %0, %cst [1] : vector<1x4x256xf32> to vector<1x256xf32>
    %2 = vector.shape_cast %1 : vector<1x256xf32> to vector<1x1x256xf32>
    %3 = arith.mulf %0, %0 : vector<1x4x256xf32>
    %cst_2 = arith.constant dense<0.000000e+00> : vector<1x256xf32>
    %4 = vector.multi_reduction <add>, %3, %cst_2 [1] : vector<1x4x256xf32> to vector<1x256xf32>
    %5 = vector.shape_cast %4 : vector<1x256xf32> to vector<1x1x256xf32>
    %cst_3 = arith.constant 2.500000e-01 : f32
    %6 = vector.broadcast %cst_3 : f32 to vector<1x1x256xf32>
    %7 = arith.mulf %2, %6 : vector<1x1x256xf32>
    %cst_4 = arith.constant 2.500000e-01 : f32
    %8 = vector.broadcast %cst_4 : f32 to vector<1x1x256xf32>
    %9 = arith.mulf %5, %8 : vector<1x1x256xf32>
    %10 = arith.mulf %7, %7 : vector<1x1x256xf32>
    %11 = arith.subf %9, %10 : vector<1x1x256xf32>
    %cst_5 = arith.constant 9.99999997E-7 : f32
    %12 = vector.broadcast %cst_5 : f32 to vector<1x1x256xf32>
    %13 = arith.addf %11, %12 : vector<1x1x256xf32>
    %14 = math.rsqrt %13 : vector<1x1x256xf32>
    %c0_6 = arith.constant 0 : index
    %c0_7 = arith.constant 0 : index
    %c0_8 = arith.constant 0 : index
    %15 = vector.load %arg2[%c0_6, %c0_7, %c0_8] : memref<1x4x1xf32, #tpu.memory_space<vmem>>, vector<1x4x1xf32>
    %c0_9 = arith.constant 0 : index
    %c0_10 = arith.constant 0 : index
    %c0_11 = arith.constant 0 : index
    %16 = vector.load %arg3[%c0_9, %c0_10, %c0_11] : memref<1x4x1xf32, #tpu.memory_space<vmem>>, vector<1x4x1xf32>
    %17 = vector.broadcast %7 : vector<1x1x256xf32> to vector<1x4x256xf32>
    %18 = arith.subf %0, %17 : vector<1x4x256xf32>
    %19 = vector.broadcast %14 : vector<1x1x256xf32> to vector<1x4x256xf32>
    %20 = arith.mulf %18, %19 : vector<1x4x256xf32>
    %21 = vector.broadcast %15 : vector<1x4x1xf32> to vector<1x4x256xf32>
    %22 = arith.mulf %20, %21 : vector<1x4x256xf32>
    %23 = vector.broadcast %16 : vector<1x4x1xf32> to vector<1x4x256xf32>
    %24 = arith.addf %22, %23 : vector<1x4x256xf32>
    %c0_12 = arith.constant 0 : index
    %c0_13 = arith.constant 0 : index
    %c0_14 = arith.constant 0 : index
    %25 = vector.load %arg4[%c0_12, %c0_13, %c0_14] : memref<1x4x256xf32, #tpu.memory_space<vmem>>, vector<1x4x256xf32>
    tpu.vector_store %arg4[%c0_12, %c0_13, %c0_14], %24 {strides = array<i32>} : memref<1x4x256xf32, #tpu.memory_space<vmem>>, vector<1x4x256xf32>,
    return
  }
  func.func @transform_0(%arg0: i32) -> (i32, i32, i32) {
    %c0_i32 = arith.constant 0 : i32
    %c0_i32_0 = arith.constant 0 : i32
    %c0_i32_1 = arith.constant 0 : i32
    return %arg0, %c0_i32, %c0_i32_0 : i32, i32, i32
  }
  func.func @transform_1(%arg0: i32) -> (i32, i32, i32) {
    %c0_i32 = arith.constant 0 : i32
    %c0_i32_0 = arith.constant 0 : i32
    %c0_i32_1 = arith.constant 0 : i32
    %c0_i32_2 = arith.constant 0 : i32
    return %c0_i32, %c0_i32_0, %c0_i32_1 : i32, i32, i32
  }
  func.func @transform_2(%arg0: i32) -> (i32, i32, i32) {
    %c0_i32 = arith.constant 0 : i32
    %c0_i32_0 = arith.constant 0 : i32
    %c0_i32_1 = arith.constant 0 : i32
    %c0_i32_2 = arith.constant 0 : i32
    return %c0_i32, %c0_i32_0, %c0_i32_1 : i32, i32, i32
  }
  func.func @transform_3(%arg0: i32) -> (i32, i32, i32) {
    %c0_i32 = arith.constant 0 : i32
    %c0_i32_0 = arith.constant 0 : i32
    %c0_i32_1 = arith.constant 0 : i32
    return %arg0, %c0_i32, %c0_i32_0 : i32, i32, i32
  }
}

</mosaic_0001>

<llo_original>
// kernel: _lambda_.1
$region0: #{_lambda_.1}
  #allocation0 [shape = 'u32[]', space=smem, size = 0x4, offset = 0x4, fixed_abs, tag = 'smem constant byte address 0x4 - core index']
  #allocation1 [shape = 'u32[144,128]{1,0:T(1,128)}', space=vmem, size = 0x12000, scoped, tag = 'internal scratch']
  %s0 = inlined_call_operand.vmem [shape: f32[2,4,256], index: 0, kind: input, shape index: {}]
  %s1 = inlined_call_operand.vmem [shape: f32[1,4,1], index: 1, kind: input, shape index: {}]
  %s2 = inlined_call_operand.vmem [shape: f32[1,4,1], index: 2, kind: input, shape index: {}]
  %s3 = inlined_call_operand.vmem [shape: f32[2,4,256], index: 3, kind: output, shape index: {}]
  %s4 = sld [smem:[#allocation0]]
  $region45: #{_lambda_.1} parent=0
    _
  %s6 = ssub.s32 1, %s4
  %s7 = scalar_select 0, %s6, %s4
  loop: start=0, step=1, limit=4
  $region2: #{_lambda_.1} parent=0 // loop_pre_header
    _
  $region3: #{_lambda_.1} parent=0 // loop_header
    %s9 = sphi 0, %s13
    %p10 = scmp.ge.s32.totalorder %s9, 4
    %s19 = sphi 0, %s21
    %s22 = sphi 0, %s19
    %s23 = sphi 0, %s22
    %s39 = sphi 0, %s23
    %s43 = sphi 0, %s43
    %s45 = sphi 0, %s43
    %s46 = sphi 0, %s45
    %s60 = sphi 0, %s46
    %s64 = sphi 0, %s64
    %s66 = sphi 0, %s64
    %s67 = sphi 0, %s66
    %s81 = sphi 0, %s67
    %s87 = sphi 0, %s89
    %s90 = sphi 0, %s87
    %s91 = sphi 0, %s90
    %s107 = sphi 0, %s91
  $region4: #{_lambda_.1} parent=0 // loop_header_branch
    %12 = sbr.rel (%p10) target = $region8
  $region5: #{_lambda_.1} parent=0 // loop_body
    %s14 = ssub.s32 %s9, 1
    %s15 = ssub.s32 %s9, 2
    %s16 = sadd.s32 %s9, 1
    %s17 = ssub.s32 %s9, %s16
    %p18 = scmp.eq.s32.totalorder %s17, 0
    %s20 = sadd.s32 %s19, 1
    %s21 = scalar_select %p18, %s19, %s20
    %p24 = pneg %p18
    %p25 = scmp.eq.s32.totalorder %s9, 1
    %p26 = por %p24, %p25
    %p27 = scmp.ne.s32.totalorder %s19, %s22
    %p28 = scmp.eq.s32.totalorder %s9, 0
    %p29 = por %p27, %p28
    %p30 = scmp.ne.s32.totalorder %s19, %s22
    %p31 = scmp.eq.s32.totalorder %s14, 1
    %p32 = por %p30, %p31
    %p33 = scmp.ne.s32.totalorder %s22, %s23
    %p34 = scmp.eq.s32.totalorder %s14, 0
    %p35 = por %p33, %p34
    %p36 = scmp.ne.s32.totalorder %s22, %s23
    %p37 = scmp.eq.s32.totalorder %s15, 1
    %p38 = por %p36, %p37
    %p40 = scmp.ne.s32.totalorder %s23, %s39
    %p41 = scmp.eq.s32.totalorder %s15, 0
    %p42 = por %p40, %p41
    %s44 = sadd.s32 %s43, 1
    %p47 = scmp.eq.s32.totalorder %s9, 1
    %p48 = scmp.ne.s32.totalorder %s43, %s45
    %p49 = scmp.eq.s32.totalorder %s9, 0
    %p50 = por %p48, %p49
    %p51 = scmp.ne.s32.totalorder %s43, %s45
    %p52 = scmp.eq.s32.totalorder %s14, 1
    %p53 = por %p51, %p52
    %p54 = scmp.ne.s32.totalorder %s45, %s46
    %p55 = scmp.eq.s32.totalorder %s14, 0
    %p56 = por %p54, %p55
    %p57 = scmp.ne.s32.totalorder %s45, %s46
    %p58 = scmp.eq.s32.totalorder %s15, 1
    %p59 = por %p57, %p58
    %p61 = scmp.ne.s32.totalorder %s46, %s60
    %p62 = scmp.eq.s32.totalorder %s15, 0
    %p63 = por %p61, %p62
    %s65 = sadd.s32 %s64, 1
    %p68 = scmp.eq.s32.totalorder %s9, 1
    %p69 = scmp.ne.s32.totalorder %s64, %s66
    %p70 = scmp.eq.s32.totalorder %s9, 0
    %p71 = por %p69, %p70
    %p72 = scmp.ne.s32.totalorder %s64, %s66
    %p73 = scmp.eq.s32.totalorder %s14, 1
    %p74 = por %p72, %p73
    %p75 = scmp.ne.s32.totalorder %s66, %s67
    %p76 = scmp.eq.s32.totalorder %s14, 0
    %p77 = por %p75, %p76
    %p78 = scmp.ne.s32.totalorder %s66, %s67
    %p79 = scmp.eq.s32.totalorder %s15, 1
    %p80 = por %p78, %p79
    %p82 = scmp.ne.s32.totalorder %s67, %s81
    %p83 = scmp.eq.s32.totalorder %s15, 0
    %p84 = por %p82, %p83
    %s85 = ssub.s32 %s9, %s16
    %p86 = scmp.eq.s32.totalorder %s85, 0
    %s88 = sadd.s32 %s87, 1
    %s89 = scalar_select %p86, %s87, %s88
    %p92 = pneg %p86
    %p93 = scmp.eq.s32.totalorder %s9, 1
    %p94 = por %p92, %p93
    %p95 = scmp.ne.s32.totalorder %s87, %s90
    %p96 = scmp.eq.s32.totalorder %s9, 0
    %p97 = por %p95, %p96
    %p98 = scmp.ne.s32.totalorder %s87, %s90
    %p99 = scmp.eq.s32.totalorder %s14, 1
    %p100 = por %p98, %p99
    %p101 = scmp.ne.s32.totalorder %s90, %s91
    %p102 = scmp.eq.s32.totalorder %s14, 0
    %p103 = por %p101, %p102
    %p104 = scmp.ne.s32.totalorder %s90, %s91
    %p105 = scmp.eq.s32.totalorder %s15, 1
    %p106 = por %p104, %p105
    %p108 = scmp.ne.s32.totalorder %s91, %s107
    %p109 = scmp.eq.s32.totalorder %s15, 0
    %p110 = por %p108, %p109
    %p111 = scmp.le.s32.totalorder 1, %s9
    %p112 = scmp.lt.s32.totalorder %s9, 3
    %p113 = pnand %p111, %p112
    %p114 = pneg %p113
    // Predicated region
    $region9: #{_lambda_.1} parent=5 // pred_check
      _
    $region10: #{_lambda_.1} parent=5 // pred_check_branch
      %116 = sbr.rel (%p113) target = $region12
    $region11: #{_lambda_.1} parent=5 // pred_region
      %s117 = ssub.s32 %s9, 1
      // Predicated region
      $region13: #{_lambda_.1} parent=11 // pred_check
        %p118 = pneg %p56
      $region14: #{_lambda_.1} parent=11 // pred_check_branch
        %120 = sbr.rel (%p118) target = $region16
      $region15: #{_lambda_.1} parent=11 // pred_region
        _
      $region16: #{_lambda_.1} parent=11 // pred_fallthru
        _
      // Predicated region
      $region17: #{_lambda_.1} parent=11 // pred_check
        %p121 = pneg %p77
      $region18: #{_lambda_.1} parent=11 // pred_check_branch
        %123 = sbr.rel (%p121) target = $region20
      $region19: #{_lambda_.1} parent=11 // pred_region
        _
      $region20: #{_lambda_.1} parent=11 // pred_fallthru
        _
    $region12: #{_lambda_.1} parent=5 // pred_fallthru
      _
    %p124 = scmp.lt.s32.totalorder %s9, 2
    // Predicated region
    $region21: #{_lambda_.1} parent=5 // pred_check
      %p125 = pneg %p124
    $region22: #{_lambda_.1} parent=5 // pred_check_branch
      %127 = sbr.rel (%p125) target = $region24
    $region23: #{_lambda_.1} parent=5 // pred_region
      // Predicated region
      $region25: #{_lambda_.1} parent=23 // pred_check
        %p128 = pneg %p29
      $region26: #{_lambda_.1} parent=23 // pred_check_branch
        %130 = sbr.rel (%p128) target = $region28
      $region27: #{_lambda_.1} parent=23 // pred_region
        %p131 = scmp.lt.s32.totalorder %s9, 1
        %s132 = scalar_select %p131, %s9, 1
        %s133 = smul.addr %s132, 2
        %s134 = smul.addr %s133, 4
        %s135 = scalar_lea.vmem %s0, %s134
      $region28: #{_lambda_.1} parent=23 // pred_fallthru
        _
    $region24: #{_lambda_.1} parent=5 // pred_fallthru
      _
    %p136 = scmp.le.s32.totalorder 1, %s9
    %p137 = scmp.lt.s32.totalorder %s9, 3
    %p138 = pnand %p136, %p137
    %p139 = pneg %p138
    // Predicated region
    $region29: #{_lambda_.1} parent=5 // pred_check
      _
    $region30: #{_lambda_.1} parent=5 // pred_check_branch
      %141 = sbr.rel (%p138) target = $region32
    $region31: #{_lambda_.1} parent=5 // pred_region
      %s142 = ssub.s32 %s9, 1
      %p143 = scmp.lt.s32.totalorder %s14, 1
      %s144 = scalar_select %p143, %s14, 1
      %s145 = smul.addr %s144, 2
      %s146 = smul.addr %s145, 4
      %s147 = scalar_lea.vmem %s0, %s146
      %p148 = pneg %p35
      %p149 = pneg %p32
      %p150 = pneg %p56
      %p151 = pneg %p53
      %p152 = pneg %p77
      %p153 = pneg %p74
      %p154 = pneg %p103
      %p155 = pneg %p100
      %p156 = scmp.lt.s32.totalorder %s14, 1
      %s157 = scalar_select %p156, %s14, 1
      %s158 = smul.addr %s157, 2
      %s159 = smul.addr %s158, 4
      %s160 = scalar_lea.vmem %s3, %s159
      %p161 = scmp.lt.s32.totalorder %s14, 1
      %s162 = scalar_select %p161, %s14, 1
      %s163 = smul.addr %s162, 2
      %s164 = smul.addr %s163, 4
      %s165 = scalar_lea.vmem %s0, %s164
      %p166 = scmp.lt.s32.totalorder %s14, 1
      %s167 = scalar_select %p166, %s14, 1
      %s168 = smul.addr %s167, 2
      %s169 = smul.addr %s168, 4
      %s170 = scalar_lea.vmem %s3, %s169
      %v171 = vld [vmem:[%s165] sm:$0xff]
      %v173 = vcombine.high %v171, %v171
      %vm175 = vcmask 1043456
      %v176 = vsel %vm175, %v171, 0.0
      %v177 = vrot.slane %v176, 4
      %v178 = vadd.f32 %v176, %v177
      %v179 = vrot.slane %v178, 2
      %v180 = vadd.f32 %v178, %v179
      %v181 = vrot.slane %v180, 1
      %v182 = vadd.f32 %v180, %v181
      %v183 = vsel %vm175, %v173, 0.0
      %v184 = vrot.slane %v183, 4
      %v185 = vadd.f32 %v183, %v184
      %v186 = vrot.slane %v185, 2
      %v187 = vadd.f32 %v185, %v186
      %v188 = vrot.slane %v187, 1
      %v189 = vadd.f32 %v187, %v188
      %v190 = vmul.f32 %v171, %v171
      %v192 = vcombine.high %v190, %v190
      %v194 = vsel %vm175, %v190, 0.0
      %v195 = vrot.slane %v194, 4
      %v196 = vadd.f32 %v194, %v195
      %v197 = vrot.slane %v196, 2
      %v198 = vadd.f32 %v196, %v197
      %v199 = vrot.slane %v198, 1
      %v200 = vadd.f32 %v198, %v199
      %v201 = vsel %vm175, %v192, 0.0
      %v202 = vrot.slane %v201, 4
      %v203 = vadd.f32 %v201, %v202
      %v204 = vrot.slane %v203, 2
      %v205 = vadd.f32 %v203, %v204
      %v206 = vrot.slane %v205, 1
      %v207 = vadd.f32 %v205, %v206
      %v208 = vmul.f32 %v182, 0.25
      %v209 = vmul.f32 %v189, 0.25
      %v210 = vmul.f32 %v200, 0.25
      %v211 = vmul.f32 %v207, 0.25
      %v212 = vmul.f32 %v208, %v208
      %v213 = vmul.f32 %v209, %v209
      %v214 = vsub.f32 %v210, %v212
      %v215 = vsub.f32 %v211, %v213
      %v216 = vadd.f32 %v214, 1e-06
      %v217 = vadd.f32 %v215, 1e-06
      %v218 = vrsqrt.pop %v216
      %v219 = vrsqrt.pop %v217
      %v220 = vld [vmem:[%s1] sm:$0xf]
      %v221 = vld [vmem:[%s2] sm:$0xf]
      %v224 = vcombine.low %v208, %v209
      %v226 = vsub.f32 %v171, %v224
      %v229 = vcombine.low %v218, %v219
      %v231 = vmul.f32 %v226, %v229
      %233 = vset.pattern.permute.xlu0 0
      %234 = vperm.xlu0 %233, %v220
      %v235 = vpop.permute.xlu0 %234
      %v237 = vunpack.c.l.s4 839922192
      %v238 = vunpack.c.0.s8 %v237
      %v239 = vlaneseq
      %v240 = vshrl.u32 %v239, 7
      %v241 = vsub.s32 %v238, %v240
      %v242 = vrot.slane %v235, %v241
      %v244 = vmul.f32 %v231, %v242
      %246 = vset.pattern.permute.xlu0 0
      %247 = vperm.xlu0 %246, %v221
      %v248 = vpop.permute.xlu0 %247
      %v250 = vunpack.c.l.s4 839922192
      %v251 = vunpack.c.0.s8 %v250
      %v252 = vlaneseq
      %v253 = vshrl.u32 %v252, 7
      %v254 = vsub.s32 %v251, %v253
      %v255 = vrot.slane %v248, %v254
      %v257 = vadd.f32 %v244, %v255
      %258 = vst [vmem:[%s170] sm:$0xff] %v257
      %p259 = scmp.lt.s32.totalorder %s14, 1
      %s260 = scalar_select %p259, %s14, 1
      %s261 = smul.addr %s260, 2
      %s262 = smul.addr %s261, 4
      %s263 = scalar_lea.vmem %s3, %s262
      // Predicated region
      $region33: #{_lambda_.1} parent=31 // pred_check
        %p264 = pneg %p100
      $region34: #{_lambda_.1} parent=31 // pred_check_branch
        %266 = sbr.rel (%p264) target = $region36
      $region35: #{_lambda_.1} parent=31 // pred_region
        _
      $region36: #{_lambda_.1} parent=31 // pred_fallthru
        _
    $region32: #{_lambda_.1} parent=5 // pred_fallthru
      _
    %p267 = scmp.le.s32.totalorder 2, %s9
    // Predicated region
    $region37: #{_lambda_.1} parent=5 // pred_check
      %p268 = pneg %p267
    $region38: #{_lambda_.1} parent=5 // pred_check_branch
      %270 = sbr.rel (%p268) target = $region40
    $region39: #{_lambda_.1} parent=5 // pred_region
      %s271 = ssub.s32 %s9, 2
      // Predicated region
      $region41: #{_lambda_.1} parent=39 // pred_check
        %p272 = pneg %p106
      $region42: #{_lambda_.1} parent=39 // pred_check_branch
        %274 = sbr.rel (%p272) target = $region44
      $region43: #{_lambda_.1} parent=39 // pred_region
        %p275 = scmp.lt.s32.totalorder %s15, 1
        %s276 = scalar_select %p275, %s15, 1
        %s277 = smul.addr %s276, 2
        %s278 = smul.addr %s277, 4
        %s279 = scalar_lea.vmem %s3, %s278
      $region44: #{_lambda_.1} parent=39 // pred_fallthru
        _
    $region40: #{_lambda_.1} parent=5 // pred_fallthru
      _
  $region6: #{_lambda_.1} parent=0 // loop_footer
    %s13 = sadd.s32 1, %s9
  $region7: #{_lambda_.1} parent=0 // loop_footer_branch
    %8 = sbr.rel target = $region3
  $region8: #{_lambda_.1} parent=0 // loop_exit
    _

</llo_original>
